<compile_context>
chip_gen: v6e
topology: v6e:2x2x1
jax: 0.10.0
libtpu: 0.0.40
codegen_flags: <defaults>
</compile_context>

<pallas_src>
import jax
import jax.numpy as jnp
from jax.experimental import pallas as pl
from jax.experimental.pallas import tpu as pltpu


def _round_up(x: int, m: int) -> int:
    return (x + m - 1) // m * m


def _sublane_multiple(dtype) -> int:
    # Native sublane tile: 8 for 4-byte, 16 for 2-byte, 32 for 1-byte dtypes.
    return {4: 8, 2: 16, 1: 32}.get(jnp.dtype(dtype).itemsize, 8)


def _pick_tn(h_out: int, tn: int) -> int:
    # Largest multiple of 128 that divides h_out and is <= tn; otherwise the full dim.
    if h_out < 256 or h_out % 128 != 0:
        return h_out
    cand = (min(tn, h_out) // 128) * 128
    while cand >= 128:
        if h_out % cand == 0:
            return cand
        cand -= 128
    return h_out


def bert_pooler_kernel(x_ref, wt_ref, b_ref, o_ref):
    # x_ref:  (TB, H_in)   first-token activations for this batch tile
    # wt_ref: (H_in, TN)   weight pre-transposed to (in_features, out_features) tile
    # b_ref:  (1, TN)      bias tile
    # o_ref:  (TB, TN)     pooled output tile
    x = x_ref[...]
    w = wt_ref[...]
    if x.dtype != w.dtype:                 # static (trace-time) branch
        x = x.astype(w.dtype)              # narrow operands -> full MXU rate
    y = jnp.dot(x, w, preferred_element_type=jnp.float32)
    y = y + b_ref[...].astype(jnp.float32)  # bias add + tanh stay in f32
    o_ref[...] = jnp.tanh(y).astype(o_ref.dtype)


def make_bert_pooler(weight, bias, *, weight_dtype=None, tb: int = 512, tn: int = 512):
    """Build a jitted BertPooler forward.

    weight: (out_features, in_features) nn.Linear layout; bias: (out_features,).
    weight_dtype: optional storage dtype for the weight (e.g. jnp.bfloat16) to halve
                  the dominant HBM read; accumulation stays f32 either way.
    Returns fn(hidden_states[B, S, H_in]) -> (B, out_features).
    """
    h_out, h_in = weight.shape

    w_dt = jnp.dtype(weight_dtype) if weight_dtype is not None else jnp.dtype(weight.dtype)

    # One-time prep, cached in the closure (no per-call transpose / cast / reshape).
    wt = jnp.asarray(weight).astype(w_dt).T            # (h_in, h_out)
    b2 = jnp.asarray(bias).reshape(1, h_out)

    tn_eff = _pick_tn(h_out, tn)
    grid_n = h_out // tn_eff

    # Weight/bias are grid-invariant when there is no N split -> single-buffer them.
    resident_kwargs = dict(pipeline_mode=pl.Buffered(1)) if grid_n == 1 else {}

    def pooled(hidden_states):
        B, S, h = hidden_states.shape
        assert h == h_in, (h, h_in)
        out_dtype = hidden_states.dtype

        # Contiguous, lane-dense first-token slab.
        x = hidden_states[:, 0, :]                      # (B, h_in)

        # Pad only to the dtype's sublane tile, never to a full batch tile.
        sub = _sublane_multiple(x.dtype)
        bp = _round_up(B, sub)
        if bp != B:
            x = jnp.pad(x, ((0, bp - B), (0, 0)))

        tb_eff = min(tb, bp)                            # multiple of `sub` by construction
        grid_b = pl.cdiv(bp, tb_eff)                    # ragged last block handled by Pallas

        o_itemsize = jnp.dtype(out_dtype).itemsize
        x_itemsize = jnp.dtype(x.dtype).itemsize
        w_itemsize = jnp.dtype(w_dt).itemsize
        b_itemsize = jnp.dtype(b2.dtype).itemsize

        # Explicit VMEM budget: double-buffered x/out, weight/bias buffers as chosen.
        w_bufs = 1 if grid_n == 1 else 2
        vmem_needed = (
            2 * tb_eff * h_in * x_itemsize              # x (double-buffered)
            + w_bufs * h_in * tn_eff * w_itemsize       # weight
            + w_bufs * 8 * tn_eff * b_itemsize          # bias (sublane-padded tile)
            + 2 * tb_eff * tn_eff * o_itemsize          # out (double-buffered)
        )
        vmem_limit = int(min(64 * 2**20,
                             max(32 * 2**20, int(vmem_needed * 1.5) + (2 << 20))))

        cost = pl.CostEstimate(
            flops=2 * bp * h_in * h_out,
            transcendentals=bp * h_out,
            bytes_accessed=(bp * h_in * x_itemsize
                            + h_in * h_out * w_itemsize
                            + h_out * b_itemsize
                            + bp * h_out * o_itemsize),
        )

        out = pl.pallas_call(
            bert_pooler_kernel,
            out_shape=jax.ShapeDtypeStruct((bp, h_out), out_dtype),
            grid_spec=pltpu.PrefetchScalarGridSpec(
                num_scalar_prefetch=0,
                grid=(grid_b, grid_n),
                in_specs=[
                    # batch-tiled activations; reused across the N axis
                    pl.BlockSpec((tb_eff, h_in), lambda i, j: (i, 0)),
                    # weight / bias: N-tiled so both v7x cores stream disjoint halves
                    pl.BlockSpec((h_in, tn_eff), lambda i, j: (0, j), **resident_kwargs),
                    pl.BlockSpec((1, tn_eff), lambda i, j: (0, j), **resident_kwargs),
                ],
                out_specs=pl.BlockSpec((tb_eff, tn_eff), lambda i, j: (i, j)),
            ),
            compiler_params=pltpu.CompilerParams(
                dimension_semantics=("parallel", "parallel"),
                vmem_limit_bytes=vmem_limit,
            ),
            cost_estimate=cost,
        )(x, wt, b2)

        return out if bp == B else out[:B]

    return jax.jit(pooled)


def bert_pooler(hidden_states, weight, bias, **kwargs):
    """One-shot convenience wrapper (prefer make_bert_pooler for repeated calls)."""
    return make_bert_pooler(weight, bias, **kwargs)(hidden_states)


if __name__ == "__main__":
    # Small shapes consistent with the module: batch=2, seq=8, hidden=32
    B, S, H = 2, 8, 32
    key = jax.random.PRNGKey(0)
    k_h, k_w, k_b = jax.random.split(key, 3)

    hidden_states = jax.random.normal(k_h, (B, S, H), dtype=jnp.float32)
    # Deterministic synthetic Linear params (shapes from nn.Linear(H, H))
    weight = jax.random.normal(k_w, (H, H), dtype=jnp.float32) * 0.02
    bias = jax.random.normal(k_b, (H,), dtype=jnp.float32) * 0.02

    # Plain-JAX reference (matches the PyTorch module in f32).
    ref = jnp.tanh(hidden_states[:, 0, :] @ weight.T + bias)

    # 1) f32 path: exact semantics of the reference.
    pooler_f32 = make_bert_pooler(weight, bias)
    out = jax.block_until_ready(pooler_f32(hidden_states))
    assert out.shape == (B, H)
    assert jnp.allclose(out, ref, atol=1e-5, rtol=1e-5)

    # 2) bf16-weight path: halves the dominant HBM read; validated at a looser tolerance.
    pooler_bf16 = make_bert_pooler(weight, bias, weight_dtype=jnp.bfloat16)
    out_bf16 = jax.block_until_ready(pooler_bf16(hidden_states))
    assert out_bf16.shape == (B, H)
    assert jnp.allclose(out_bf16, ref, atol=3e-2, rtol=3e-2)

    print("KERNEL_OK")
</pallas_src>

<mosaic_0001>
module attributes {stable_mosaic.version = 11 : i64} {
  func.func @bert_pooler_kernel(%arg0: i32, %arg1: i32, %arg2: memref<8x32xf32, #tpu.memory_space<vmem>>, %arg3: memref<32x32xf32, #tpu.memory_space<vmem>>, %arg4: memref<1x32xf32, #tpu.memory_space<vmem>>, %arg5: memref<8x32xf32, #tpu.memory_space<vmem>>) attributes {dimension_semantics = [#tpu.dimension_semantics<parallel>, #tpu.dimension_semantics<parallel>], iteration_bounds = array<i64: 1, 1>, scalar_prefetch = 0 : i64, scratch_operands = 0 : i64, tpu.core_type = #tpu.core_type<tc>, window_params = [{transform_indices = @transform_0, window_bounds = array<i64: 8, 32>}, {pipeline_mode = #tpu.pipeline_mode<synchronous>, transform_indices = @transform_1, window_bounds = array<i64: 32, 32>}, {pipeline_mode = #tpu.pipeline_mode<synchronous>, transform_indices = @transform_2, window_bounds = array<i64: 1, 32>}, {transform_indices = @transform_3, window_bounds = array<i64: 8, 32>}]} {
    %c0 = arith.constant 0 : index
    %c0_0 = arith.constant 0 : index
    %0 = vector.load %arg2[%c0, %c0_0] : memref<8x32xf32, #tpu.memory_space<vmem>>, vector<8x32xf32>
    %c0_1 = arith.constant 0 : index
    %c0_2 = arith.constant 0 : index
    %1 = vector.load %arg3[%c0_1, %c0_2] : memref<32x32xf32, #tpu.memory_space<vmem>>, vector<32x32xf32>
    %cst = arith.constant dense<0.000000e+00> : vector<8x32xf32>
    %2 = tpu.matmul %0, %1, %cst {dimension_numbers = #tpu.dot_dimension_numbers<[1], [0], [0], [1], [0, 0, 1, 1], [], []>} : vector<8x32xf32>, vector<32x32xf32>, vector<8x32xf32> -> vector<8x32xf32>
    %c0_3 = arith.constant 0 : index
    %c0_4 = arith.constant 0 : index
    %3 = vector.load %arg4[%c0_3, %c0_4] : memref<1x32xf32, #tpu.memory_space<vmem>>, vector<1x32xf32>
    %4 = vector.broadcast %3 : vector<1x32xf32> to vector<8x32xf32>
    %5 = arith.addf %2, %4 : vector<8x32xf32>
    %6 = math.tanh %5 : vector<8x32xf32>
    %c0_5 = arith.constant 0 : index
    %c0_6 = arith.constant 0 : index
    %7 = vector.load %arg5[%c0_5, %c0_6] : memref<8x32xf32, #tpu.memory_space<vmem>>, vector<8x32xf32>
    tpu.vector_store %arg5[%c0_5, %c0_6], %6 {strides = array<i32>} : memref<8x32xf32, #tpu.memory_space<vmem>>, vector<8x32xf32>,
    return
  }
  func.func @transform_0(%arg0: i32, %arg1: i32) -> (i32, i32) {
    %c0_i32 = arith.constant 0 : i32
    %c0_i32_0 = arith.constant 0 : i32
    return %arg0, %c0_i32 : i32, i32
  }
  func.func @transform_1(%arg0: i32, %arg1: i32) -> (i32, i32) {
    %c0_i32 = arith.constant 0 : i32
    %c0_i32_0 = arith.constant 0 : i32
    return %c0_i32, %arg1 : i32, i32
  }
  func.func @transform_2(%arg0: i32, %arg1: i32) -> (i32, i32) {
    %c0_i32 = arith.constant 0 : i32
    %c0_i32_0 = arith.constant 0 : i32
    return %c0_i32, %arg1 : i32, i32
  }
  func.func @transform_3(%arg0: i32, %arg1: i32) -> (i32, i32) {
    %c0_i32 = arith.constant 0 : i32
    return %arg0, %arg1 : i32, i32
  }
}

</mosaic_0001>

<llo_original>
// kernel: pooled.1
$region0: #{pooled.1}
  #allocation0 [shape = 'u32[]', space=smem, size = 0x4, offset = 0x4, fixed_abs, tag = 'smem constant byte address 0x4 - core index']
  #allocation1 [shape = 'u32[144,128]{1,0:T(1,128)}', space=vmem, size = 0x12000, scoped, tag = 'internal scratch']
  %s0 = inlined_call_operand.vmem [shape: f32[8,32], index: 0, kind: input, shape index: {}]
  %s1 = inlined_call_operand.hbm [shape: f32[32,32], index: 1, kind: input, shape index: {}]
  %s2 = inlined_call_operand.vmem [shape: f32[1,32], index: 2, kind: input, shape index: {}]
  %s3 = inlined_call_operand.vmem [shape: f32[8,32], index: 3, kind: output, shape index: {}]
  %s4 = sld [smem:[#allocation0]]
  $region26: #{pooled.1} parent=0
    _
  %s6 = ssub.s32 1, %s4
  %s7 = scalar_select 0, %s6, %s4
  $region1: #{pooled.1} parent=0
    #allocation2 [shape = 'u8[16384]{0}', space=vmem, size = 0x4000, scoped, tag = 'input window, operand 1, single buffered']
    #allocation3 [shape = 's32[1]{0}', space=sflag, size = 0x4, scoped, tag = 'scoped memory for pooled.1']
    %8 = vsyncpa [#allocation3], 0
    // Predicated region
    $region2: #{pooled.1} parent=1 // pred_check
      _
    $region3: #{pooled.1} parent=1 // pred_check_branch
      %10 = sbr.rel (0) target = $region5
    $region4: #{pooled.1} parent=1 // pred_region
      _
    $region5: #{pooled.1} parent=1 // pred_fallthru
      _
    // Predicated region
    $region6: #{pooled.1} parent=1 // pred_check
      _
    $region7: #{pooled.1} parent=1 // pred_check_branch
      %12 = sbr.rel (0) target = $region9
    $region8: #{pooled.1} parent=1 // pred_region
      %s14 = ssub.s32 512, 512
      %15 = vsyncadd [#allocation3], %s14
      %s16 = sshll.u32 [#allocation2], 4
      %s17 = int_to_ptr.vmem [resolvable:$true] %s16
      %22 = dma.hbm_to_vmem [thread:$0]  %s1, 512, %s17, [#allocation3], 128, 128, 8
    $region9: #{pooled.1} parent=1 // pred_fallthru
      _
    // Predicated region
    $region10: #{pooled.1} parent=1 // pred_check
      _
    $region11: #{pooled.1} parent=1 // pred_check_branch
      %24 = sbr.rel (0) target = $region13
    $region12: #{pooled.1} parent=1 // pred_region
      _
    $region13: #{pooled.1} parent=1 // pred_fallthru
      _
    // Predicated region
    $region14: #{pooled.1} parent=1 // pred_check
      _
    $region15: #{pooled.1} parent=1 // pred_check_branch
      %26 = sbr.rel (0) target = $region17
    $region16: #{pooled.1} parent=1 // pred_region
      %27 = dma.done [#allocation3], 512
    $region17: #{pooled.1} parent=1 // pred_fallthru
      _
    %v28 = vld [vmem:[%s0] sm:$0xff]
    %v29 = vld [vmem:[#allocation2] sm:$0xff]
    %v30 = vld [vmem:[#allocation2 + $0x8] sm:$0xff]
    %v31 = vld [vmem:[#allocation2 + $0x10] sm:$0xff]
    %v32 = vld [vmem:[#allocation2 + $0x18] sm:$0xff]
    %v33 = vld [vmem:[%s2] sm:$0x1]
    %v35 = vlaneseq
    %v36 = vshrl.u32 %v35, 7
    %v37 = vsub.s32 0, %v36
    %v38 = vrot.slane %v33, %v37
    %vm40 = vcmask 261120
    %v42 = vsel %vm40, %v28, 0
    %44 = vmatprep.subr.mxu0 0.0
    %45 = vmatpush1.msra.mxu0 0.0
    %46 = vmatprep.subr.mxu0 0.0
    %47 = vmatpush1.msra.mxu0 0.0
    %48 = vmatprep.subr.mxu0 0.0
    %49 = vmatpush1.msra.mxu0 0.0
    %50 = vmatprep.subr.mxu0 0.0
    %51 = vmatpush1.msra.mxu0 0.0
    %52 = vmatprep.subr.mxu0 0.0
    %53 = vmatpush1.msra.mxu0 0.0
    %54 = vmatprep.subr.mxu0 0.0
    %55 = vmatpush1.msra.mxu0 0.0
    %56 = vmatprep.subr.mxu0 0.0
    %57 = vmatpush1.msra.mxu0 0.0
    %58 = vmatprep.subr.mxu0 0.0
    %59 = vmatpush1.msra.mxu0 0.0
    %60 = vmatprep.subr.mxu0 0.0
    %61 = vmatpush1.msra.mxu0 0.0
    %62 = vmatprep.subr.mxu0 0.0
    %63 = vmatpush1.msra.mxu0 0.0
    %64 = vmatprep.subr.mxu0 0.0
    %65 = vmatpush1.msra.mxu0 0.0
    %66 = vmatprep.subr.mxu0 0.0
    %67 = vmatpush1.msra.mxu0 0.0
    %68 = vmatprep.subr.mxu0 0.0
    %69 = vmatpush1.msra.mxu0 %v32
    %70 = vmatprep.subr.mxu0 0.0
    %71 = vmatpush1.msra.mxu0 %v31
    %72 = vmatprep.subr.mxu0 0.0
    %73 = vmatpush1.msra.mxu0 %v30
    %74 = vmatprep.subr.mxu0 0.0
    %75 = vmatpush1.msra.mxu0 %v29
    %76 = vmatprep.subr.mxu0 0.0
    %77 = vmatpush2.msra.mxu0 0.0
    %78 = vmatprep.subr.mxu0 0.0
    %79 = vmatpush2.msra.mxu0 0.0
    %80 = vmatprep.subr.mxu0 0.0
    %81 = vmatpush2.msra.mxu0 0.0
    %82 = vmatprep.subr.mxu0 0.0
    %83 = vmatpush2.msra.mxu0 0.0
    %84 = vmatprep.subr.mxu0 0.0
    %85 = vmatpush2.msra.mxu0 0.0
    %86 = vmatprep.subr.mxu0 0.0
    %87 = vmatpush2.msra.mxu0 0.0
    %88 = vmatprep.subr.mxu0 0.0
    %89 = vmatpush2.msra.mxu0 0.0
    %90 = vmatprep.subr.mxu0 0.0
    %91 = vmatpush2.msra.mxu0 0.0
    %92 = vmatprep.subr.mxu0 0.0
    %93 = vmatpush2.msra.mxu0 0.0
    %94 = vmatprep.subr.mxu0 0.0
    %95 = vmatpush2.msra.mxu0 0.0
    %96 = vmatprep.subr.mxu0 0.0
    %97 = vmatpush2.msra.mxu0 0.0
    %98 = vmatprep.subr.mxu0 0.0
    %99 = vmatpush2.msra.mxu0 0.0
    %100 = vmatprep.subr.mxu0 0.0
    %101 = vmatpush2.msra.mxu0 0.0
    %102 = vmatprep.subr.mxu0 0.0
    %103 = vmatpush2.msra.mxu0 0.0
    %104 = vmatprep.subr.mxu0 0.0
    %105 = vmatpush2.msra.mxu0 0.0
    %106 = vmatprep.subr.mxu0 0.0
    %107 = vmatpush2.msra.mxu0 0.0
    %108 = vmatprep.mubr.f32.mxu0 0.0
    %109 = vmatmul.mubr.f32.gmra.mxu0 %v42
    %v110 = vpop.f32.mrf.mxu0
    %v111 = vadd.f32 %v38, %v110
    %v112 = vpop.f32.mrf.mxu0
    %113 = vdwg.mxu0
    %v114 = vtanh.pop %v111
    %115 = vst.msk [vmem:[%s3] sm:$0xff] %vm40, %v114
    // Predicated region
    $region18: #{pooled.1} parent=1 // pred_check
      _
    $region19: #{pooled.1} parent=1 // pred_check_branch
      %117 = sbr.rel (0) target = $region21
    $region20: #{pooled.1} parent=1 // pred_region
      _
    $region21: #{pooled.1} parent=1 // pred_fallthru
      _
    // Predicated region
    $region22: #{pooled.1} parent=1 // pred_check
      _
    $region23: #{pooled.1} parent=1 // pred_check_branch
      %119 = sbr.rel (0) target = $region25
    $region24: #{pooled.1} parent=1 // pred_region
      _
    $region25: #{pooled.1} parent=1 // pred_fallthru
      _
    %120 = vsyncpa [#allocation3], 1

</llo_original>
